<compile_context>
chip_gen: v6e
topology: v6e:2x2x1
jax: 0.10.0
libtpu: 0.0.40
codegen_flags: <defaults>
</compile_context>

<pallas_src>
import functools

import jax
import jax.numpy as jnp
from jax.experimental import pallas as pl
from jax.experimental.pallas import tpu as pltpu


# ----------------------------------------------------------------------------
# Kernel
# ----------------------------------------------------------------------------
def _upsample_nearest2x_kernel(x_ref, e_ref, o_ref, *, n_chunks, chunk,
                               l_total, l_tile, ragged_l):
    """x_ref: (C_t, L_t) input tile, e_ref: (chunk, 2*chunk) 0/1 expansion
    matrix, o_ref: (C_t, 2*L_t) output tile.  out[:, j] = x[:, j // 2]."""
    li = pl.program_id(2)
    e = e_ref[...]                                        # (chunk, 2*chunk)
    for s in range(n_chunks):                             # static, <= 4
        xs = x_ref[:, s * chunk:(s + 1) * chunk]          # (C_t, chunk)
        if xs.dtype != e.dtype:
            xs = xs.astype(e.dtype)
        if ragged_l:
            # Zero lanes past the true length so uninitialised block padding
            # (possibly NaN/Inf) cannot leak into valid outputs through 0*NaN
            # inside the dot.
            valid = l_total - (li * l_tile + s * chunk)
            lane = jax.lax.broadcasted_iota(jnp.int32, xs.shape, 1)
            xs = jnp.where(lane < valid, xs, jnp.zeros_like(xs))
        ys = jax.lax.dot_general(                         # MXU lane expand
            xs, e,
            dimension_numbers=(((1,), (0,)), ((), ())),
            precision=jax.lax.Precision.HIGHEST,
            preferred_element_type=jnp.float32)           # (C_t, 2*chunk)
        o_ref[:, s * 2 * chunk:(s + 1) * 2 * chunk] = ys.astype(o_ref.dtype)


# ----------------------------------------------------------------------------
# Wrapper / tiling
# ----------------------------------------------------------------------------
def _choose_tiles(c, l):
    # Channel tile: full C when it fits, else 512 (multiple of 8 sublanes).
    c_t = c if c <= 512 else 512
    # Length tile: full L when L < 128, else a multiple of 128 (<= 512 lanes).
    if l <= 128:
        l_t = l
    else:
        l_t = 128 * min(4, l // 128)
    chunk = min(l_t, 128)          # MXU contraction width per dot
    return c_t, l_t, chunk


def upsample1d_nearest2x(x):
    """Nearest-neighbour 2x upsample along the last dim of a (N, C, L) array."""
    if x.ndim != 3:
        raise ValueError(f"expected (N, C, L), got shape {x.shape}")
    n, c, l = map(int, x.shape)
    c_t, l_t, chunk = _choose_tiles(c, l)
    n_chunks = l_t // chunk                     # exact by construction
    ragged_l = (l % l_t) != 0

    # 0/1 expansion matrix: E[i, 2i] = E[i, 2i+1] = 1  (chunk, 2*chunk).
    e_dtype = jnp.bfloat16 if x.dtype == jnp.bfloat16 else jnp.float32
    e = (jnp.arange(2 * chunk)[None, :] // 2
         == jnp.arange(chunk)[:, None]).astype(e_dtype)

    kernel = functools.partial(
        _upsample_nearest2x_kernel,
        n_chunks=n_chunks, chunk=chunk, l_total=l, l_tile=l_t,
        ragged_l=ragged_l)

    itemsize = jnp.dtype(x.dtype).itemsize
    return pl.pallas_call(
        kernel,
        out_shape=jax.ShapeDtypeStruct((n, c, 2 * l), x.dtype),
        grid=(n, pl.cdiv(c, c_t), pl.cdiv(l, l_t)),
        in_specs=[
            # Squeezed leading batch dim; activation tile (C_t, L_t).
            pl.BlockSpec((None, c_t, l_t), lambda ni, ci, li: (ni, ci, li)),
            # Tiny constant expansion matrix, resident across all steps.
            pl.BlockSpec((chunk, 2 * chunk), lambda ni, ci, li: (0, 0)),
        ],
        out_specs=pl.BlockSpec((None, c_t, 2 * l_t),
                               lambda ni, ci, li: (ni, ci, li)),
        compiler_params=pltpu.CompilerParams(
            dimension_semantics=("parallel", "parallel", "parallel")),
        # Mem-bound VPU/DMA (+small MXU) kernel: tell XLA the real cost.
        cost_estimate=pl.CostEstimate(
            flops=2 * n * c * (2 * l) * chunk,
            transcendentals=0,
            bytes_accessed=3 * n * c * l * itemsize),
    )(x, e)


# ----------------------------------------------------------------------------
# Module (forward only)
# ----------------------------------------------------------------------------
class UpSample1d:
    """JAX/Pallas port of StyleTTS2 UpSample1d (forward only)."""

    def __init__(self, layer_type):
        self.layer_type = layer_type

    def __call__(self, x):
        if self.layer_type == 'none':
            return x                                # nn.Identity-like
        return upsample1d_nearest2x(x)


# ----------------------------------------------------------------------------
# Self-test
# ----------------------------------------------------------------------------
if __name__ == "__main__":
    key = jax.random.PRNGKey(0)
    k1, k2 = jax.random.split(key)

    # Small shape consistent with the module: (batch=2, channels=4, length=16).
    x = jax.random.normal(k1, (2, 4, 16), dtype=jnp.float32)
    up = UpSample1d('nearest')                      # any non-'none' layer_type
    y = jax.block_until_ready(up(x))
    ref = jnp.repeat(x, 2, axis=-1)                 # == F.interpolate(x, 2, 'nearest')
    assert y.shape == (2, 4, 32), y.shape
    assert jnp.allclose(y, ref, atol=1e-5, rtol=1e-5)

    # Larger shape exercising channel/length tiling, multi-chunk dots and the
    # ragged-L masked edge (640 = 512 + 128).
    x2 = jax.random.normal(k2, (2, 384, 640), dtype=jnp.float32)
    y2 = jax.block_until_ready(upsample1d_nearest2x(x2))
    ref2 = jnp.repeat(x2, 2, axis=-1)
    assert y2.shape == (2, 384, 1280), y2.shape
    assert jnp.allclose(y2, ref2, atol=1e-5, rtol=1e-5)

    # 'none' -> identity
    ident = UpSample1d('none')
    assert jnp.array_equal(ident(x), x)

    print("KERNEL_OK")
</pallas_src>

<mosaic_0001>
module attributes {stable_mosaic.version = 11 : i64} {
  func.func @_upsample_nearest2x_kernel(%arg0: i32, %arg1: i32, %arg2: i32, %arg3: memref<1x4x16xf32, #tpu.memory_space<vmem>>, %arg4: memref<16x32xf32, #tpu.memory_space<vmem>>, %arg5: memref<1x4x32xf32, #tpu.memory_space<vmem>>) attributes {dimension_semantics = [#tpu.dimension_semantics<parallel>, #tpu.dimension_semantics<parallel>, #tpu.dimension_semantics<parallel>], iteration_bounds = array<i64: 2, 1, 1>, scalar_prefetch = 0 : i64, scratch_operands = 0 : i64, tpu.core_type = #tpu.core_type<tc>, window_params = [{transform_indices = @transform_0, window_bounds = array<i64: 1, 4, 16>}, {pipeline_mode = #tpu.pipeline_mode<synchronous>, transform_indices = @transform_1, window_bounds = array<i64: 16, 32>}, {transform_indices = @transform_2, window_bounds = array<i64: 1, 4, 32>}]} {
    %c0 = arith.constant 0 : index
    %c0_0 = arith.constant 0 : index
    %0 = vector.load %arg4[%c0, %c0_0] : memref<16x32xf32, #tpu.memory_space<vmem>>, vector<16x32xf32>
    %c0_1 = arith.constant 0 : index
    %c0_2 = arith.constant 0 : index
    %c0_3 = arith.constant 0 : index
    %1 = vector.load %arg3[%c0_1, %c0_2, %c0_3] : memref<1x4x16xf32, #tpu.memory_space<vmem>>, vector<1x4x16xf32>
    %2 = vector.shape_cast %1 : vector<1x4x16xf32> to vector<4x16xf32>
    %cst = arith.constant dense<0.000000e+00> : vector<4x32xf32>
    %3 = tpu.matmul %2, %0, %cst {dimension_numbers = #tpu.dot_dimension_numbers<[1], [0], [0], [1], [0, 0, 1, 1], [], []>, precision = #tpu.contract_precision<fp32>} : vector<4x16xf32>, vector<16x32xf32>, vector<4x32xf32> -> vector<4x32xf32>
    %c0_4 = arith.constant 0 : index
    %c0_5 = arith.constant 0 : index
    %c0_6 = arith.constant 0 : index
    %4 = vector.load %arg5[%c0_4, %c0_5, %c0_6] : memref<1x4x32xf32, #tpu.memory_space<vmem>>, vector<1x4x32xf32>
    %5 = vector.shape_cast %4 : vector<1x4x32xf32> to vector<4x32xf32>
    %6 = vector.shape_cast %3 : vector<4x32xf32> to vector<1x4x32xf32>
    tpu.vector_store %arg5[%c0_4, %c0_5, %c0_6], %6 {strides = array<i32>} : memref<1x4x32xf32, #tpu.memory_space<vmem>>, vector<1x4x32xf32>,
    return
  }
  func.func @transform_0(%arg0: i32, %arg1: i32, %arg2: i32) -> (i32, i32, i32) {
    %c0_i32 = arith.constant 0 : i32
    return %arg0, %arg1, %arg2 : i32, i32, i32
  }
  func.func @transform_1(%arg0: i32, %arg1: i32, %arg2: i32) -> (i32, i32) {
    %c0_i32 = arith.constant 0 : i32
    %c0_i32_0 = arith.constant 0 : i32
    %c0_i32_1 = arith.constant 0 : i32
    return %c0_i32, %c0_i32_0 : i32, i32
  }
  func.func @transform_2(%arg0: i32, %arg1: i32, %arg2: i32) -> (i32, i32, i32) {
    %c0_i32 = arith.constant 0 : i32
    return %arg0, %arg1, %arg2 : i32, i32, i32
  }
}

</mosaic_0001>

<llo_original>
// kernel: tpu_custom_call.1
$region0: #{tpu_custom_call.1}
  #allocation0 [shape = 'u32[]', space=smem, size = 0x4, offset = 0x4, fixed_abs, tag = 'smem constant byte address 0x4 - core index']
  #allocation1 [shape = 'u32[144,128]{1,0:T(1,128)}', space=vmem, size = 0x12000, scoped, tag = 'internal scratch']
  %s0 = inlined_call_operand.hbm [shape: f32[2,4,16], index: 0, kind: input, shape index: {}]
  %s1 = inlined_call_operand.hbm [shape: f32[16,32], index: 1, kind: input, shape index: {}]
  %s2 = inlined_call_operand.hbm [shape: f32[2,4,32], index: 2, kind: output, shape index: {}]
  %s3 = sld [smem:[#allocation0]]
  $region49: #{tpu_custom_call.1} parent=0
    _
  %s5 = ssub.s32 1, %s3
  %s6 = scalar_select 0, %s5, %s3
  $region1: #{tpu_custom_call.1} parent=0
    #allocation2 [shape = 'u8[4096]{0}', space=vmem, size = 0x1000, scoped, tag = 'input window, operand 0']
    #allocation3 [shape = 's32[2]{0}', space=sflag, size = 0x8, scoped, tag = 'scoped memory for tpu_custom_call.1']
    #allocation4 [shape = 's32[2]{0}', space=sflag, size = 0x8, scoped, tag = 'scoped memory for tpu_custom_call.1']
    #allocation5 [shape = 'u8[8192]{0}', space=vmem, size = 0x2000, scoped, tag = 'input window, operand 1, single buffered']
    #allocation6 [shape = 's32[1]{0}', space=sflag, size = 0x4, scoped, tag = 'scoped memory for tpu_custom_call.1']
    #allocation7 [shape = 'u8[4096]{0}', space=vmem, size = 0x1000, scoped, tag = 'output window, operand 0']
    %7 = vsyncpa [#allocation3], 0
    %s8 = scalar_lea.sflag [#allocation3], 1
    %9 = vsyncpa %s8, 0
    %10 = vsyncpa [#allocation6], 0
    %11 = vsyncpa [#allocation4], 0
    %s12 = scalar_lea.sflag [#allocation4], 1
    %13 = vsyncpa %s12, 0
    loop: start=0, step=1, limit=4
    $region2: #{tpu_custom_call.1} parent=1 // loop_pre_header
      _
    $region3: #{tpu_custom_call.1} parent=1 // loop_header
      %s15 = sphi 0, %s19
      %p16 = scmp.ge.s32.totalorder %s15, 4
      %s22 = sphi 0, %s41
      %s23 = sphi 0, %s37
      %s24 = sphi 0, %s33
      %s25 = sphi 0, %s22
      %s26 = sphi 0, %s23
      %s27 = sphi 0, %s24
      %s28 = sphi 0, %s25
      %s29 = sphi 0, %s26
      %s30 = sphi 0, %s27
      %s48 = sphi 0, %s50
      %s51 = sphi 0, %s48
      %s52 = sphi 0, %s51
      %s68 = sphi 0, %s52
      %s72 = sphi 0, %s72
      %s74 = sphi 0, %s72
      %s75 = sphi 0, %s74
      %s89 = sphi 0, %s75
      %s99 = sphi 0, %s101
      %s102 = sphi 0, %s99
      %s103 = sphi 0, %s102
      %s119 = sphi 0, %s103
    $region4: #{tpu_custom_call.1} parent=1 // loop_header_branch
      %18 = sbr.rel (%p16) target = $region8
    $region5: #{tpu_custom_call.1} parent=1 // loop_body
      %s20 = ssub.s32 %s15, 1
      %s21 = ssub.s32 %s15, 2
      %s31 = sadd.s32 1, %s24
      %p32 = scmp.ge.s32.totalorder %s31, 1
      %s33 = scalar_select %p32, 0, %s31
      %s34 = sadd.s32 1, %s23
      %s35 = scalar_select %p32, %s34, %s23
      %p36 = scmp.ge.s32.totalorder %s35, 1
      %s37 = scalar_select %p36, 0, %s35
      %s38 = sadd.s32 1, %s22
      %s39 = scalar_select %p36, %s38, %s22
      %p40 = scmp.ge.s32.totalorder %s39, 2
      %s41 = scalar_select %p40, 0, %s39
      %s42 = ssub.s32 %s22, %s41
      %s43 = ssub.s32 %s23, %s37
      %s44 = sor.u32 %s42, %s43
      %s45 = ssub.s32 %s24, %s33
      %s46 = sor.u32 %s44, %s45
      %p47 = scmp.eq.s32.totalorder %s46, 0
      %s49 = sadd.s32 %s48, 1
      %s50 = scalar_select %p47, %s48, %s49
      %p53 = pneg %p47
      %p54 = scmp.eq.s32.totalorder %s15, 1
      %p55 = por %p53, %p54
      %p56 = scmp.ne.s32.totalorder %s48, %s51
      %p57 = scmp.eq.s32.totalorder %s15, 0
      %p58 = por %p56, %p57
      %p59 = scmp.ne.s32.totalorder %s48, %s51
      %p60 = scmp.eq.s32.totalorder %s20, 1
      %p61 = por %p59, %p60
      %p62 = scmp.ne.s32.totalorder %s51, %s52
      %p63 = scmp.eq.s32.totalorder %s20, 0
      %p64 = por %p62, %p63
      %p65 = scmp.ne.s32.totalorder %s51, %s52
      %p66 = scmp.eq.s32.totalorder %s21, 1
      %p67 = por %p65, %p66
      %p69 = scmp.ne.s32.totalorder %s52, %s68
      %p70 = scmp.eq.s32.totalorder %s21, 0
      %p71 = por %p69, %p70
      %s73 = sadd.s32 %s72, 1
      %p76 = scmp.eq.s32.totalorder %s15, 1
      %p77 = scmp.ne.s32.totalorder %s72, %s74
      %p78 = scmp.eq.s32.totalorder %s15, 0
      %p79 = por %p77, %p78
      %p80 = scmp.ne.s32.totalorder %s72, %s74
      %p81 = scmp.eq.s32.totalorder %s20, 1
      %p82 = por %p80, %p81
      %p83 = scmp.ne.s32.totalorder %s74, %s75
      %p84 = scmp.eq.s32.totalorder %s20, 0
      %p85 = por %p83, %p84
      %p86 = scmp.ne.s32.totalorder %s74, %s75
      %p87 = scmp.eq.s32.totalorder %s21, 1
      %p88 = por %p86, %p87
      %p90 = scmp.ne.s32.totalorder %s75, %s89
      %p91 = scmp.eq.s32.totalorder %s21, 0
      %p92 = por %p90, %p91
      %s93 = ssub.s32 %s22, %s41
      %s94 = ssub.s32 %s23, %s37
      %s95 = sor.u32 %s93, %s94
      %s96 = ssub.s32 %s24, %s33
      %s97 = sor.u32 %s95, %s96
      %p98 = scmp.eq.s32.totalorder %s97, 0
      %s100 = sadd.s32 %s99, 1
      %s101 = scalar_select %p98, %s99, %s100
      %p104 = pneg %p98
      %p105 = scmp.eq.s32.totalorder %s15, 1
      %p106 = por %p104, %p105
      %p107 = scmp.ne.s32.totalorder %s99, %s102
      %p108 = scmp.eq.s32.totalorder %s15, 0
      %p109 = por %p107, %p108
      %p110 = scmp.ne.s32.totalorder %s99, %s102
      %p111 = scmp.eq.s32.totalorder %s20, 1
      %p112 = por %p110, %p111
      %p113 = scmp.ne.s32.totalorder %s102, %s103
      %p114 = scmp.eq.s32.totalorder %s20, 0
      %p115 = por %p113, %p114
      %p116 = scmp.ne.s32.totalorder %s102, %s103
      %p117 = scmp.eq.s32.totalorder %s21, 1
      %p118 = por %p116, %p117
      %p120 = scmp.ne.s32.totalorder %s103, %s119
      %p121 = scmp.eq.s32.totalorder %s21, 0
      %p122 = por %p120, %p121
      %p123 = scmp.le.s32.totalorder 1, %s15
      %p124 = scmp.lt.s32.totalorder %s15, 3
      %p125 = pnand %p123, %p124
      %p126 = pneg %p125
      // Predicated region
      $region9: #{tpu_custom_call.1} parent=5 // pred_check
        _
      $region10: #{tpu_custom_call.1} parent=5 // pred_check_branch
        %128 = sbr.rel (%p125) target = $region12
      $region11: #{tpu_custom_call.1} parent=5 // pred_region
        %s129 = ssub.s32 %s15, 1
        // Predicated region
        $region13: #{tpu_custom_call.1} parent=11 // pred_check
          %p130 = pneg %p85
        $region14: #{tpu_custom_call.1} parent=11 // pred_check_branch
          %132 = sbr.rel (%p130) target = $region16
        $region15: #{tpu_custom_call.1} parent=11 // pred_region
          %s134 = ssub.s32 256, 256
          %135 = vsyncadd [#allocation6], %s134
          %s136 = sshll.u32 [#allocation5], 4
          %s137 = int_to_ptr.vmem [resolvable:$true] %s136
          %142 = dma.hbm_to_vmem [thread:$0]  %s1, 256, %s137, [#allocation6], 128, 128, 8
        $region16: #{tpu_custom_call.1} parent=11 // pred_fallthru
          _
      $region12: #{tpu_custom_call.1} parent=5 // pred_fallthru
        _
      %p143 = scmp.lt.s32.totalorder %s15, 2
      // Predicated region
      $region17: #{tpu_custom_call.1} parent=5 // pred_check
        %p144 = pneg %p143
      $region18: #{tpu_custom_call.1} parent=5 // pred_check_branch
        %146 = sbr.rel (%p144) target = $region20
      $region19: #{tpu_custom_call.1} parent=5 // pred_region
        // Predicated region
        $region21: #{tpu_custom_call.1} parent=19 // pred_check
          %p147 = pneg %p58
        $region22: #{tpu_custom_call.1} parent=19 // pred_check_branch
          %149 = sbr.rel (%p147) target = $region24
        $region23: #{tpu_custom_call.1} parent=19 // pred_region
          %s150 = sand.u32 %s48, 1
          %s151 = scalar_lea.sflag [#allocation3], %s150
          %s152 = sand.u32 %s48, 1
          %s153 = smul.addr %s152, 4
          %s154 = scalar_lea.vmem [#allocation2], %s153
          %s156 = ssub.s32 64, 64
          %157 = vsyncadd %s151, %s156
          %s158 = sadd.s32 %s24, %s23
          %s159 = sadd.s32 %s158, %s22
          %s160 = smul.addr %s159, 64
          %s161 = scalar_lea.hbm %s0, %s160
          %s163 = sshll.u32 %s154, 4
          %s164 = int_to_ptr.vmem [resolvable:$true] %s163
          %166 = dma.hbm_to_vmem [thread:$0]  %s161, 64, %s164, %s151
        $region24: #{tpu_custom_call.1} parent=19 // pred_fallthru
          _
      $region20: #{tpu_custom_call.1} parent=5 // pred_fallthru
        _
      %p167 = scmp.le.s32.totalorder 1, %s15
      %p168 = scmp.lt.s32.totalorder %s15, 3
      %p169 = pnand %p167, %p168
      %p170 = pneg %p169
      // Predicated region
      $region25: #{tpu_custom_call.1} parent=5 // pred_check
        _
      $region26: #{tpu_custom_call.1} parent=5 // pred_check_branch
        %172 = sbr.rel (%p169) target = $region28
      $region27: #{tpu_custom_call.1} parent=5 // pred_region
        %s173 = ssub.s32 %s15, 1
        %s174 = sand.u32 %s51, 1
        %s175 = scalar_lea.sflag [#allocation3], %s174
        %s176 = sand.u32 %s51, 1
        %s177 = smul.addr %s176, 4
        %s178 = scalar_lea.vmem [#allocation2], %s177
        // Predicated region
        $region29: #{tpu_custom_call.1} parent=27 // pred_check
          %p179 = pneg %p64
        $region30: #{tpu_custom_call.1} parent=27 // pred_check_branch
          %181 = sbr.rel (%p179) target = $region32
        $region31: #{tpu_custom_call.1} parent=27 // pred_region
          %182 = dma.done %s175, 64
        $region32: #{tpu_custom_call.1} parent=27 // pred_fallthru
          _
        // Predicated region
        $region33: #{tpu_custom_call.1} parent=27 // pred_check
          %p183 = pneg %p85
        $region34: #{tpu_custom_call.1} parent=27 // pred_check_branch
          %185 = sbr.rel (%p183) target = $region36
        $region35: #{tpu_custom_call.1} parent=27 // pred_region
          %186 = dma.done [#allocation6], 256
        $region36: #{tpu_custom_call.1} parent=27 // pred_fallthru
          _
        %s187 = sand.u32 %s51, 1
        %s188 = scalar_lea.sflag [#allocation3], %s187
        %s189 = sand.u32 %s51, 1
        %s190 = smul.addr %s189, 4
        %s191 = scalar_lea.vmem [#allocation2], %s190
        %p192 = pneg %p64
        %p193 = pneg %p61
        %p194 = pneg %p85
        %p195 = pneg %p82
        %p196 = pneg %p115
        %p197 = pneg %p112
        %s198 = sand.u32 %s102, 1
        %s199 = scalar_lea.sflag [#allocation4], %s198
        %s200 = sand.u32 %s102, 1
        %s201 = smul.addr %s200, 4
        %s202 = scalar_lea.vmem [#allocation7], %s201
        %v203 = vld [vmem:[#allocation5] sm:$0xff]
        %v204 = vld [vmem:[#allocation5 + $0x8] sm:$0xff]
        %v205 = vld [vmem:[%s178] sm:$0xf]
        %vm206 = vcmask 130048
        %v208 = vsel %vm206, %v205, 0
        %210 = vmatprep.subr.mxu0 0.0
        %211 = vmatpush1.msra.mxu0 0.0
        %212 = vmatprep.subr.mxu0 0.0
        %213 = vmatpush1.msra.mxu0 0.0
        %214 = vmatprep.subr.mxu0 0.0
        %215 = vmatpush1.msra.mxu0 0.0
        %216 = vmatprep.subr.mxu0 0.0
        %217 = vmatpush1.msra.mxu0 0.0
        %218 = vmatprep.subr.mxu0 0.0
        %219 = vmatpush1.msra.mxu0 0.0
        %220 = vmatprep.subr.mxu0 0.0
        %221 = vmatpush1.msra.mxu0 0.0
        %222 = vmatprep.subr.mxu0 0.0
        %223 = vmatpush1.msra.mxu0 0.0
        %224 = vmatprep.subr.mxu0 0.0
        %225 = vmatpush1.msra.mxu0 0.0
        %226 = vmatprep.subr.mxu0 0.0
        %227 = vmatpush1.msra.mxu0 0.0
        %228 = vmatprep.subr.mxu0 0.0
        %229 = vmatpush1.msra.mxu0 0.0
        %230 = vmatprep.subr.mxu0 0.0
        %231 = vmatpush1.msra.mxu0 0.0
        %232 = vmatprep.subr.mxu0 0.0
        %233 = vmatpush1.msra.mxu0 0.0
        %234 = vmatprep.subr.mxu0 0.0
        %235 = vmatpush1.msra.mxu0 0.0
        %236 = vmatprep.subr.mxu0 0.0
        %237 = vmatpush1.msra.mxu0 0.0
        %238 = vmatprep.subr.mxu0 0.0
        %v239 = vand.u32 %v204, 4294901760
        %240 = vmatpush1.msra.mxu0 %v239
        %241 = vmatprep.subr.mxu0 0.0
        %v242 = vand.u32 %v203, 4294901760
        %243 = vmatpush1.msra.mxu0 %v242
        %244 = vmatprep.subr.mxu0 0.0
        %245 = vmatpush2.msra.mxu0 0.0
        %246 = vmatprep.subr.mxu0 0.0
        %247 = vmatpush2.msra.mxu0 0.0
        %248 = vmatprep.subr.mxu0 0.0
        %249 = vmatpush2.msra.mxu0 0.0
        %250 = vmatprep.subr.mxu0 0.0
        %251 = vmatpush2.msra.mxu0 0.0
        %252 = vmatprep.subr.mxu0 0.0
        %253 = vmatpush2.msra.mxu0 0.0
        %254 = vmatprep.subr.mxu0 0.0
        %255 = vmatpush2.msra.mxu0 0.0
        %256 = vmatprep.subr.mxu0 0.0
        %257 = vmatpush2.msra.mxu0 0.0
        %258 = vmatprep.subr.mxu0 0.0
        %259 = vmatpush2.msra.mxu0 0.0
        %260 = vmatprep.subr.mxu0 0.0
        %261 = vmatpush2.msra.mxu0 0.0
        %262 = vmatprep.subr.mxu0 0.0
        %263 = vmatpush2.msra.mxu0 0.0
        %264 = vmatprep.subr.mxu0 0.0
        %265 = vmatpush2.msra.mxu0 0.0
        %266 = vmatprep.subr.mxu0 0.0
        %267 = vmatpush2.msra.mxu0 0.0
        %268 = vmatprep.subr.mxu0 0.0
        %269 = vmatpush2.msra.mxu0 0.0
        %270 = vmatprep.subr.mxu0 0.0
        %271 = vmatpush2.msra.mxu0 0.0
        %272 = vmatprep.subr.mxu0 0.0
        %273 = vmatpush2.msra.mxu0 0.0
        %274 = vmatprep.subr.mxu0 0.0
        %275 = vmatpush2.msra.mxu0 0.0
        %276 = vmatprep.mubr.f32.mxu0 0.0
        %v277 = vand.u32 %v208, 4294901760
        %v278 = vsub.f32 %v208, %v277
        %v279 = vand.u32 %v278, 4294901760
        %v280 = vsub.f32 %v278, %v279
        %v281 = vand.u32 %v280, 4294901760
        %282 = vmatmul.mubr.f32.gmra.mxu0 %v281
        %v283 = vpop.f32.mrf.mxu0
        %v284 = vadd.f32 0.0, %v283
        %v285 = vpop.f32.mrf.mxu0
        %286 = vdwg.mxu0
        %287 = vmatprep.subr.mxu0 0.0
        %288 = vmatpush1.msra.mxu0 0.0
        %289 = vmatprep.subr.mxu0 0.0
        %290 = vmatpush1.msra.mxu0 0.0
        %291 = vmatprep.subr.mxu0 0.0
        %292 = vmatpush1.msra.mxu0 0.0
        %293 = vmatprep.subr.mxu0 0.0
        %294 = vmatpush1.msra.mxu0 0.0
        %295 = vmatprep.subr.mxu0 0.0
        %296 = vmatpush1.msra.mxu0 0.0
        %297 = vmatprep.subr.mxu0 0.0
        %298 = vmatpush1.msra.mxu0 0.0
        %299 = vmatprep.subr.mxu0 0.0
        %300 = vmatpush1.msra.mxu0 0.0
        %301 = vmatprep.subr.mxu0 0.0
        %302 = vmatpush1.msra.mxu0 0.0
        %303 = vmatprep.subr.mxu0 0.0
        %304 = vmatpush1.msra.mxu0 0.0
        %305 = vmatprep.subr.mxu0 0.0
        %306 = vmatpush1.msra.mxu0 0.0
        %307 = vmatprep.subr.mxu0 0.0
        %308 = vmatpush1.msra.mxu0 0.0
        %309 = vmatprep.subr.mxu0 0.0
        %310 = vmatpush1.msra.mxu0 0.0
        %311 = vmatprep.subr.mxu0 0.0
        %312 = vmatpush1.msra.mxu0 0.0
        %313 = vmatprep.subr.mxu0 0.0
        %314 = vmatpush1.msra.mxu0 0.0
        %315 = vmatprep.subr.mxu0 0.0
        %v316 = vand.u32 %v204, 4294901760
        %v317 = vsub.f32 %v204, %v316
        %v318 = vand.u32 %v317, 4294901760
        %v319 = vsub.f32 %v317, %v318
        %v320 = vand.u32 %v319, 4294901760
        %321 = vmatpush1.msra.mxu0 %v320
        %322 = vmatprep.subr.mxu0 0.0
        %v323 = vand.u32 %v203, 4294901760
        %v324 = vsub.f32 %v203, %v323
        %v325 = vand.u32 %v324, 4294901760
        %v326 = vsub.f32 %v324, %v325
        %v327 = vand.u32 %v326, 4294901760
        %328 = vmatpush1.msra.mxu0 %v327
        %329 = vmatprep.subr.mxu0 0.0
        %330 = vmatpush2.msra.mxu0 0.0
        %331 = vmatprep.subr.mxu0 0.0
        %332 = vmatpush2.msra.mxu0 0.0
        %333 = vmatprep.subr.mxu0 0.0
        %334 = vmatpush2.msra.mxu0 0.0
        %335 = vmatprep.subr.mxu0 0.0
        %336 = vmatpush2.msra.mxu0 0.0
        %337 = vmatprep.subr.mxu0 0.0
        %338 = vmatpush2.msra.mxu0 0.0
        %339 = vmatprep.subr.mxu0 0.0
        %340 = vmatpush2.msra.mxu0 0.0
        %341 = vmatprep.subr.mxu0 0.0
        %342 = vmatpush2.msra.mxu0 0.0
        %343 = vmatprep.subr.mxu0 0.0
        %344 = vmatpush2.msra.mxu0 0.0
        %345 = vmatprep.subr.mxu0 0.0
        %346 = vmatpush2.msra.mxu0 0.0
        %347 = vmatprep.subr.mxu0 0.0
        %348 = vmatpush2.msra.mxu0 0.0
        %349 = vmatprep.subr.mxu0 0.0
        %350 = vmatpush2.msra.mxu0 0.0
        %351 = vmatprep.subr.mxu0 0.0
        %352 = vmatpush2.msra.mxu0 0.0
        %353 = vmatprep.subr.mxu0 0.0
        %354 = vmatpush2.msra.mxu0 0.0
        %355 = vmatprep.subr.mxu0 0.0
        %356 = vmatpush2.msra.mxu0 0.0
        %357 = vmatprep.subr.mxu0 0.0
        %358 = vmatpush2.msra.mxu0 0.0
        %359 = vmatprep.subr.mxu0 0.0
        %360 = vmatpush2.msra.mxu0 0.0
        %361 = vmatprep.mubr.f32.mxu0 0.0
        %v362 = vand.u32 %v208, 4294901760
        %363 = vmatmul.mubr.f32.gmra.mxu0 %v362
        %v364 = vpop.f32.mrf.mxu0
        %v365 = vadd.f32 %v284, %v364
        %v366 = vpop.f32.mrf.mxu0
        %367 = vdwg.mxu0
        %368 = vmatprep.subr.mxu0 0.0
        %369 = vmatpush1.msra.mxu0 0.0
        %370 = vmatprep.subr.mxu0 0.0
        %371 = vmatpush1.msra.mxu0 0.0
        %372 = vmatprep.subr.mxu0 0.0
        %373 = vmatpush1.msra.mxu0 0.0
        %374 = vmatprep.subr.mxu0 0.0
        %375 = vmatpush1.msra.mxu0 0.0
        %376 = vmatprep.subr.mxu0 0.0
        %377 = vmatpush1.msra.mxu0 0.0
        %378 = vmatprep.subr.mxu0 0.0
        %379 = vmatpush1.msra.mxu0 0.0
        %380 = vmatprep.subr.mxu0 0.0
        %381 = vmatpush1.msra.mxu0 0.0
        %382 = vmatprep.subr.mxu0 0.0
        %383 = vmatpush1.msra.mxu0 0.0
        %384 = vmatprep.subr.mxu0 0.0
        %385 = vmatpush1.msra.mxu0 0.0
        %386 = vmatprep.subr.mxu0 0.0
        %387 = vmatpush1.msra.mxu0 0.0
        %388 = vmatprep.subr.mxu0 0.0
        %389 = vmatpush1.msra.mxu0 0.0
        %390 = vmatprep.subr.mxu0 0.0
        %391 = vmatpush1.msra.mxu0 0.0
        %392 = vmatprep.subr.mxu0 0.0
        %393 = vmatpush1.msra.mxu0 0.0
        %394 = vmatprep.subr.mxu0 0.0
        %395 = vmatpush1.msra.mxu0 0.0
        %396 = vmatprep.subr.mxu0 0.0
        %v397 = vand.u32 %v204, 4294901760
        %v398 = vsub.f32 %v204, %v397
        %399 = vmatpush1.msra.mxu0 %v398
        %400 = vmatprep.subr.mxu0 0.0
        %v401 = vand.u32 %v203, 4294901760
        %v402 = vsub.f32 %v203, %v401
        %403 = vmatpush1.msra.mxu0 %v402
        %404 = vmatprep.subr.mxu0 0.0
        %405 = vmatpush2.msra.mxu0 0.0
        %406 = vmatprep.subr.mxu0 0.0
        %407 = vmatpush2.msra.mxu0 0.0
        %408 = vmatprep.subr.mxu0 0.0
        %409 = vmatpush2.msra.mxu0 0.0
        %410 = vmatprep.subr.mxu0 0.0
        %411 = vmatpush2.msra.mxu0 0.0
        %412 = vmatprep.subr.mxu0 0.0
        %413 = vmatpush2.msra.mxu0 0.0
        %414 = vmatprep.subr.mxu0 0.0
        %415 = vmatpush2.msra.mxu0 0.0
        %416 = vmatprep.subr.mxu0 0.0
        %417 = vmatpush2.msra.mxu0 0.0
        %418 = vmatprep.subr.mxu0 0.0
        %419 = vmatpush2.msra.mxu0 0.0
        %420 = vmatprep.subr.mxu0 0.0
        %421 = vmatpush2.msra.mxu0 0.0
        %422 = vmatprep.subr.mxu0 0.0
        %423 = vmatpush2.msra.mxu0 0.0
        %424 = vmatprep.subr.mxu0 0.0
        %425 = vmatpush2.msra.mxu0 0.0
        %426 = vmatprep.subr.mxu0 0.0
        %427 = vmatpush2.msra.mxu0 0.0
        %428 = vmatprep.subr.mxu0 0.0
        %429 = vmatpush2.msra.mxu0 0.0
        %430 = vmatprep.subr.mxu0 0.0
        %431 = vmatpush2.msra.mxu0 0.0
        %432 = vmatprep.subr.mxu0 0.0
        %433 = vmatpush2.msra.mxu0 0.0
        %434 = vmatprep.subr.mxu0 0.0
        %435 = vmatpush2.msra.mxu0 0.0
        %436 = vmatprep.mubr.f32.mxu0 0.0
        %v437 = vand.u32 %v208, 4294901760
        %v438 = vsub.f32 %v208, %v437
        %439 = vmatmul.mubr.f32.gmra.mxu0 %v438
        %v440 = vpop.f32.mrf.mxu0
        %v441 = vadd.f32 %v365, %v440
        %v442 = vpop.f32.mrf.mxu0
        %443 = vdwg.mxu0
        %444 = vmatprep.subr.mxu0 0.0
        %445 = vmatpush1.msra.mxu0 0.0
        %446 = vmatprep.subr.mxu0 0.0
        %447 = vmatpush1.msra.mxu0 0.0
        %448 = vmatprep.subr.mxu0 0.0
        %449 = vmatpush1.msra.mxu0 0.0
        %450 = vmatprep.subr.mxu0 0.0
        %451 = vmatpush1.msra.mxu0 0.0
        %452 = vmatprep.subr.mxu0 0.0
        %453 = vmatpush1.msra.mxu0 0.0
        %454 = vmatprep.subr.mxu0 0.0
        %455 = vmatpush1.msra.mxu0 0.0
        %456 = vmatprep.subr.mxu0 0.0
        %457 = vmatpush1.msra.mxu0 0.0
        %458 = vmatprep.subr.mxu0 0.0
        %459 = vmatpush1.msra.mxu0 0.0
        %460 = vmatprep.subr.mxu0 0.0
        %461 = vmatpush1.msra.mxu0 0.0
        %462 = vmatprep.subr.mxu0 0.0
        %463 = vmatpush1.msra.mxu0 0.0
        %464 = vmatprep.subr.mxu0 0.0
        %465 = vmatpush1.msra.mxu0 0.0
        %466 = vmatprep.subr.mxu0 0.0
        %467 = vmatpush1.msra.mxu0 0.0
        %468 = vmatprep.subr.mxu0 0.0
        %469 = vmatpush1.msra.mxu0 0.0
        %470 = vmatprep.subr.mxu0 0.0
        %471 = vmatpush1.msra.mxu0 0.0
        %472 = vmatprep.subr.mxu0 0.0
        %v473 = vand.u32 %v204, 4294901760
        %474 = vmatpush1.msra.mxu0 %v473
        %475 = vmatprep.subr.mxu0 0.0
        %v476 = vand.u32 %v203, 4294901760
        %477 = vmatpush1.msra.mxu0 %v476
        %478 = vmatprep.subr.mxu0 0.0
        %479 = vmatpush2.msra.mxu0 0.0
        %480 = vmatprep.subr.mxu0 0.0
        %481 = vmatpush2.msra.mxu0 0.0
        %482 = vmatprep.subr.mxu0 0.0
        %483 = vmatpush2.msra.mxu0 0.0
        %484 = vmatprep.subr.mxu0 0.0
        %485 = vmatpush2.msra.mxu0 0.0
        %486 = vmatprep.subr.mxu0 0.0
        %487 = vmatpush2.msra.mxu0 0.0
        %488 = vmatprep.subr.mxu0 0.0
        %489 = vmatpush2.msra.mxu0 0.0
        %490 = vmatprep.subr.mxu0 0.0
        %491 = vmatpush2.msra.mxu0 0.0
        %492 = vmatprep.subr.mxu0 0.0
        %493 = vmatpush2.msra.mxu0 0.0
        %494 = vmatprep.subr.mxu0 0.0
        %495 = vmatpush2.msra.mxu0 0.0
        %496 = vmatprep.subr.mxu0 0.0
        %497 = vmatpush2.msra.mxu0 0.0
        %498 = vmatprep.subr.mxu0 0.0
        %499 = vmatpush2.msra.mxu0 0.0
        %500 = vmatprep.subr.mxu0 0.0
        %501 = vmatpush2.msra.mxu0 0.0
        %502 = vmatprep.subr.mxu0 0.0
        %503 = vmatpush2.msra.mxu0 0.0
        %504 = vmatprep.subr.mxu0 0.0
        %505 = vmatpush2.msra.mxu0 0.0
        %506 = vmatprep.subr.mxu0 0.0
        %507 = vmatpush2.msra.mxu0 0.0
        %508 = vmatprep.subr.mxu0 0.0
        %509 = vmatpush2.msra.mxu0 0.0
        %510 = vmatprep.mubr.f32.mxu0 0.0
        %v511 = vand.u32 %v208, 4294901760
        %v512 = vsub.f32 %v208, %v511
        %v513 = vand.u32 %v512, 4294901760
        %514 = vmatmul.mubr.f32.gmra.mxu0 %v513
        %v515 = vpop.f32.mrf.mxu0
        %v516 = vadd.f32 %v441, %v515
        %v517 = vpop.f32.mrf.mxu0
        %518 = vdwg.mxu0
        %519 = vmatprep.subr.mxu0 0.0
        %520 = vmatpush1.msra.mxu0 0.0
        %521 = vmatprep.subr.mxu0 0.0
        %522 = vmatpush1.msra.mxu0 0.0
        %523 = vmatprep.subr.mxu0 0.0
        %524 = vmatpush1.msra.mxu0 0.0
        %525 = vmatprep.subr.mxu0 0.0
        %526 = vmatpush1.msra.mxu0 0.0
        %527 = vmatprep.subr.mxu0 0.0
        %528 = vmatpush1.msra.mxu0 0.0
        %529 = vmatprep.subr.mxu0 0.0
        %530 = vmatpush1.msra.mxu0 0.0
        %531 = vmatprep.subr.mxu0 0.0
        %532 = vmatpush1.msra.mxu0 0.0
        %533 = vmatprep.subr.mxu0 0.0
        %534 = vmatpush1.msra.mxu0 0.0
        %535 = vmatprep.subr.mxu0 0.0
        %536 = vmatpush1.msra.mxu0 0.0
        %537 = vmatprep.subr.mxu0 0.0
        %538 = vmatpush1.msra.mxu0 0.0
        %539 = vmatprep.subr.mxu0 0.0
        %540 = vmatpush1.msra.mxu0 0.0
        %541 = vmatprep.subr.mxu0 0.0
        %542 = vmatpush1.msra.mxu0 0.0
        %543 = vmatprep.subr.mxu0 0.0
        %544 = vmatpush1.msra.mxu0 0.0
        %545 = vmatprep.subr.mxu0 0.0
        %546 = vmatpush1.msra.mxu0 0.0
        %547 = vmatprep.subr.mxu0 0.0
        %v548 = vand.u32 %v204, 4294901760
        %v549 = vsub.f32 %v204, %v548
        %v550 = vand.u32 %v549, 4294901760
        %551 = vmatpush1.msra.mxu0 %v550
        %552 = vmatprep.subr.mxu0 0.0
        %v553 = vand.u32 %v203, 4294901760
        %v554 = vsub.f32 %v203, %v553
        %v555 = vand.u32 %v554, 4294901760
        %556 = vmatpush1.msra.mxu0 %v555
        %557 = vmatprep.subr.mxu0 0.0
        %558 = vmatpush2.msra.mxu0 0.0
        %559 = vmatprep.subr.mxu0 0.0
        %560 = vmatpush2.msra.mxu0 0.0
        %561 = vmatprep.subr.mxu0 0.0
        %562 = vmatpush2.msra.mxu0 0.0
        %563 = vmatprep.subr.mxu0 0.0
        %564 = vmatpush2.msra.mxu0 0.0
        %565 = vmatprep.subr.mxu0 0.0
        %566 = vmatpush2.msra.mxu0 0.0
        %567 = vmatprep.subr.mxu0 0.0
        %568 = vmatpush2.msra.mxu0 0.0
        %569 = vmatprep.subr.mxu0 0.0
        %570 = vmatpush2.msra.mxu0 0.0
        %571 = vmatprep.subr.mxu0 0.0
        %572 = vmatpush2.msra.mxu0 0.0
        %573 = vmatprep.subr.mxu0 0.0
        %574 = vmatpush2.msra.mxu0 0.0
        %575 = vmatprep.subr.mxu0 0.0
        %576 = vmatpush2.msra.mxu0 0.0
        %577 = vmatprep.subr.mxu0 0.0
        %578 = vmatpush2.msra.mxu0 0.0
        %579 = vmatprep.subr.mxu0 0.0
        %580 = vmatpush2.msra.mxu0 0.0
        %581 = vmatprep.subr.mxu0 0.0
        %582 = vmatpush2.msra.mxu0 0.0
        %583 = vmatprep.subr.mxu0 0.0
        %584 = vmatpush2.msra.mxu0 0.0
        %585 = vmatprep.subr.mxu0 0.0
        %586 = vmatpush2.msra.mxu0 0.0
        %587 = vmatprep.subr.mxu0 0.0
        %588 = vmatpush2.msra.mxu0 0.0
        %589 = vmatprep.mubr.f32.mxu0 0.0
        %v590 = vand.u32 %v208, 4294901760
        %591 = vmatmul.mubr.f32.gmra.mxu0 %v590
        %v592 = vpop.f32.mrf.mxu0
        %v593 = vadd.f32 %v516, %v592
        %v594 = vpop.f32.mrf.mxu0
        %595 = vdwg.mxu0
        %596 = vmatprep.subr.mxu0 0.0
        %597 = vmatpush1.msra.mxu0 0.0
        %598 = vmatprep.subr.mxu0 0.0
        %599 = vmatpush1.msra.mxu0 0.0
        %600 = vmatprep.subr.mxu0 0.0
        %601 = vmatpush1.msra.mxu0 0.0
        %602 = vmatprep.subr.mxu0 0.0
        %603 = vmatpush1.msra.mxu0 0.0
        %604 = vmatprep.subr.mxu0 0.0
        %605 = vmatpush1.msra.mxu0 0.0
        %606 = vmatprep.subr.mxu0 0.0
        %607 = vmatpush1.msra.mxu0 0.0
        %608 = vmatprep.subr.mxu0 0.0
        %609 = vmatpush1.msra.mxu0 0.0
        %610 = vmatprep.subr.mxu0 0.0
        %611 = vmatpush1.msra.mxu0 0.0
        %612 = vmatprep.subr.mxu0 0.0
        %613 = vmatpush1.msra.mxu0 0.0
        %614 = vmatprep.subr.mxu0 0.0
        %615 = vmatpush1.msra.mxu0 0.0
        %616 = vmatprep.subr.mxu0 0.0
        %617 = vmatpush1.msra.mxu0 0.0
        %618 = vmatprep.subr.mxu0 0.0
        %619 = vmatpush1.msra.mxu0 0.0
        %620 = vmatprep.subr.mxu0 0.0
        %621 = vmatpush1.msra.mxu0 0.0
        %622 = vmatprep.subr.mxu0 0.0
        %623 = vmatpush1.msra.mxu0 0.0
        %624 = vmatprep.subr.mxu0 0.0
        %v625 = vand.u32 %v204, 4294901760
        %626 = vmatpush1.msra.mxu0 %v625
        %627 = vmatprep.subr.mxu0 0.0
        %v628 = vand.u32 %v203, 4294901760
        %629 = vmatpush1.msra.mxu0 %v628
        %630 = vmatprep.subr.mxu0 0.0
        %631 = vmatpush2.msra.mxu0 0.0
        %632 = vmatprep.subr.mxu0 0.0
        %633 = vmatpush2.msra.mxu0 0.0
        %634 = vmatprep.subr.mxu0 0.0
        %635 = vmatpush2.msra.mxu0 0.0
        %636 = vmatprep.subr.mxu0 0.0
        %637 = vmatpush2.msra.mxu0 0.0
        %638 = vmatprep.subr.mxu0 0.0
        %639 = vmatpush2.msra.mxu0 0.0
        %640 = vmatprep.subr.mxu0 0.0
        %641 = vmatpush2.msra.mxu0 0.0
        %642 = vmatprep.subr.mxu0 0.0
        %643 = vmatpush2.msra.mxu0 0.0
        %644 = vmatprep.subr.mxu0 0.0
        %645 = vmatpush2.msra.mxu0 0.0
        %646 = vmatprep.subr.mxu0 0.0
        %647 = vmatpush2.msra.mxu0 0.0
        %648 = vmatprep.subr.mxu0 0.0
        %649 = vmatpush2.msra.mxu0 0.0
        %650 = vmatprep.subr.mxu0 0.0
        %651 = vmatpush2.msra.mxu0 0.0
        %652 = vmatprep.subr.mxu0 0.0
        %653 = vmatpush2.msra.mxu0 0.0
        %654 = vmatprep.subr.mxu0 0.0
        %655 = vmatpush2.msra.mxu0 0.0
        %656 = vmatprep.subr.mxu0 0.0
        %657 = vmatpush2.msra.mxu0 0.0
        %658 = vmatprep.subr.mxu0 0.0
        %659 = vmatpush2.msra.mxu0 0.0
        %660 = vmatprep.subr.mxu0 0.0
        %661 = vmatpush2.msra.mxu0 0.0
        %662 = vmatprep.mubr.f32.mxu0 0.0
        %v663 = vand.u32 %v208, 4294901760
        %664 = vmatmul.mubr.f32.gmra.mxu0 %v663
        %v665 = vpop.f32.mrf.mxu0
        %v666 = vadd.f32 %v593, %v665
        %v667 = vpop.f32.mrf.mxu0
        %668 = vdwg.mxu0
        %vm669 = vcmask 257024
        %670 = vst.msk [vmem:[%s202] sm:$0xf] %vm669, %v666
        %s671 = sand.u32 %s102, 1
        %s672 = scalar_lea.sflag [#allocation4], %s671
        %s673 = sand.u32 %s102, 1
        %s674 = smul.addr %s673, 4
        %s675 = scalar_lea.vmem [#allocation7], %s674
        // Predicated region
        $region37: #{tpu_custom_call.1} parent=27 // pred_check
          %p676 = pneg %p112
        $region38: #{tpu_custom_call.1} parent=27 // pred_check_branch
          %678 = sbr.rel (%p676) target = $region40
        $region39: #{tpu_custom_call.1} parent=27 // pred_region
          %s680 = ssub.s32 64, 64
          %681 = vsyncadd %s672, %s680
          %s682 = sadd.s32 %s27, %s26
          %s683 = sadd.s32 %s682, %s25
          %s684 = smul.addr %s683, 64
          %s685 = scalar_lea.hbm %s2, %s684
          %s687 = sshll.u32 %s675, 4
          %s688 = int_to_ptr.vmem [resolvable:$true] %s687
          %690 = dma.vmem_to_hbm [thread:$0]  %s688, 64, %s685, %s672
        $region40: #{tpu_custom_call.1} parent=27 // pred_fallthru
          _
      $region28: #{tpu_custom_call.1} parent=5 // pred_fallthru
        _
      %p691 = scmp.le.s32.totalorder 2, %s15
      // Predicated region
      $region41: #{tpu_custom_call.1} parent=5 // pred_check
        %p692 = pneg %p691
      $region42: #{tpu_custom_call.1} parent=5 // pred_check_branch
        %694 = sbr.rel (%p692) target = $region44
      $region43: #{tpu_custom_call.1} parent=5 // pred_region
        %s695 = ssub.s32 %s15, 2
        // Predicated region
        $region45: #{tpu_custom_call.1} parent=43 // pred_check
          %p696 = pneg %p118
        $region46: #{tpu_custom_call.1} parent=43 // pred_check_branch
          %698 = sbr.rel (%p696) target = $region48
        $region47: #{tpu_custom_call.1} parent=43 // pred_region
          %s699 = sand.u32 %s103, 1
          %s700 = scalar_lea.sflag [#allocation4], %s699
          %s701 = sand.u32 %s103, 1
          %s702 = smul.addr %s701, 4
          %s703 = scalar_lea.vmem [#allocation7], %s702
          %704 = dma.done %s700, 64
        $region48: #{tpu_custom_call.1} parent=43 // pred_fallthru
          _
      $region44: #{tpu_custom_call.1} parent=5 // pred_fallthru
        _
    $region6: #{tpu_custom_call.1} parent=1 // loop_footer
      %s19 = sadd.s32 1, %s15
    $region7: #{tpu_custom_call.1} parent=1 // loop_footer_branch
      %14 = sbr.rel target = $region3
    $region8: #{tpu_custom_call.1} parent=1 // loop_exit
      _
    %705 = vsyncpa [#allocation3], 1
    %s706 = scalar_lea.sflag [#allocation3], 1
    %707 = vsyncpa %s706, 1
    %708 = vsyncpa [#allocation6], 1
    %709 = vsyncpa [#allocation4], 1
    %s710 = scalar_lea.sflag [#allocation4], 1
    %711 = vsyncpa %s710, 1

</llo_original>
